<compile_context>
chip_gen: v7x
topology: tpu7x:2x2x1
jax: 0.10.0
libtpu: 0.0.40
codegen_flags: <defaults>
</compile_context>

<pallas_src>
import functools

import jax
import jax.numpy as jnp
from jax.experimental import pallas as pl
from jax.experimental.pallas import tpu as pltpu


# ---------------------------------------------------------------------------
# helpers
# ---------------------------------------------------------------------------
def _round_up(v, m):
    return (v + m - 1) // m * m


def _sublane(dtype):
    # sublane tile: 8 for 4-byte, 16 for 2-byte, 32 for 1-byte dtypes
    return max(8, 32 // max(1, jnp.dtype(dtype).itemsize))


def _vmem_capacity():
    """Per-core VMEM bytes; conservative 64 MiB (v7x) fallback if unavailable."""
    try:
        return int(pltpu.get_tpu_info().vmem_capacity_bytes)
    except Exception:
        return 64 << 20


def _pick_block_k(k_pad, m_pad, itemsize, cap, block_k=None):
    """Largest lane-aligned K tile whose double-buffered feature DMA (plus the
    resident target/accumulator) fits comfortably in scoped VMEM."""
    if block_k is not None:
        bk = max(128, (int(block_k) // 128) * 128)
        return int(min(bk, k_pad))
    fixed = 3 * m_pad * m_pad * 4            # target buffers + f32 accumulator
    budget = max(2 << 20, min(cap // 2, 48 << 20) - fixed)
    bk = (budget // (2 * m_pad * itemsize)) // 128 * 128
    return int(max(128, min(bk, k_pad)))


def _vmem_limit(est_bytes, cap):
    limit = int(est_bytes * 5 // 4) + (2 << 20)
    return int(min(max(limit, 16 << 20), cap * 3 // 4))


def _prep_features(x, m_pad):
    """NCHW -> (m_pad, k_pad) row-major view, K padded only to 128.
    Fast path: no jnp.pad (no extra HBM copy) when already aligned."""
    a, b, c, d = x.shape
    m, k = a * b, c * d
    f = x.reshape(m, k)                      # metadata-only reshape
    k_pad = _round_up(k, 128)
    if m_pad != m or k_pad != k:
        f = jnp.pad(f, ((0, m_pad - m), (0, k_pad - k)))
    return f, k_pad


# ---------------------------------------------------------------------------
# kernels
# ---------------------------------------------------------------------------
def _masked_tile(feat_ref, bk, k_pad, ragged, use_bf16):
    f = feat_ref[...]
    if ragged:
        # Last K tile extends past the (128-aligned) feature width; the OOB
        # columns Pallas hands us are undefined, so zero them before the MXU.
        rem = k_pad - pl.program_id(0) * bk          # >= bk on non-last steps
        col = jax.lax.broadcasted_iota(jnp.int32, f.shape, 1)
        f = jnp.where(col < rem, f, jnp.zeros([], f.dtype))
    if use_bf16 and f.dtype != jnp.bfloat16:
        f = f.astype(jnp.bfloat16)   # bf16 MXU feed (f32 accumulation below)
    return f


def _gram_kernel(feat_ref, g_ref, *, bk, k_pad, ragged, inv_n, use_bf16):
    """G += F_tile @ F_tile^T across the K grid; normalized on the last step."""
    k = pl.program_id(0)

    @pl.when(k == 0)
    def _():
        g_ref[...] = jnp.zeros_like(g_ref)

    f = _masked_tile(feat_ref, bk, k_pad, ragged, use_bf16)
    g_ref[...] += jax.lax.dot_general(
        f, f, (((1,), (1,)), ((), ())), preferred_element_type=jnp.float32)

    @pl.when(k == pl.num_programs(0) - 1)
    def _():
        g_ref[...] = g_ref[...] * inv_n


def _style_loss_kernel(feat_ref, target_ref, loss_ref, acc_ref, *,
                       bk, k_pad, ragged, inv_n, inv_mm, use_bf16):
    """Fused gram + MSE. acc accumulates F@F^T over K tiles; on the last tile,
    normalize by x's own dims, diff against the (already normalized) target
    and emit the scalar loss via SMEM."""
    k = pl.program_id(0)

    @pl.when(k == 0)
    def _():
        acc_ref[...] = jnp.zeros_like(acc_ref)

    f = _masked_tile(feat_ref, bk, k_pad, ragged, use_bf16)
    acc_ref[...] += jax.lax.dot_general(
        f, f, (((1,), (1,)), ((), ())), preferred_element_type=jnp.float32)

    @pl.when(k == pl.num_programs(0) - 1)
    def _():
        diff = acc_ref[...] * inv_n - target_ref[...]
        loss_ref[0, 0] = jnp.sum(diff * diff) * inv_mm


# ---------------------------------------------------------------------------
# pallas_call wrappers
# ---------------------------------------------------------------------------
def _gram_padded(x, m_pad, block_k=None, use_bf16=False):
    """Normalized padded gram matrix, f32, shape (m_pad, m_pad)."""
    a, b, c, d = x.shape
    itemsize = jnp.dtype(x.dtype).itemsize
    feats, k_pad = _prep_features(x, m_pad)
    cap = _vmem_capacity()
    bk = _pick_block_k(k_pad, m_pad, itemsize, cap, block_k)
    kt = -(-k_pad // bk)
    ragged = (kt * bk != k_pad)
    inv_n = 1.0 / float(a * b * c * d)
    kernel = functools.partial(_gram_kernel, bk=bk, k_pad=k_pad,
                               ragged=ragged, inv_n=inv_n, use_bf16=use_bf16)
    est = 2 * m_pad * bk * itemsize + 2 * m_pad * m_pad * 4

    return pl.pallas_call(
        kernel,
        out_shape=jax.ShapeDtypeStruct((m_pad, m_pad), jnp.float32),
        grid_spec=pltpu.PrefetchScalarGridSpec(
            num_scalar_prefetch=0,
            grid=(kt,),
            in_specs=[pl.BlockSpec((m_pad, bk), lambda kk: (0, kk))],
            out_specs=pl.BlockSpec((m_pad, m_pad), lambda kk: (0, 0)),
        ),
        compiler_params=pltpu.CompilerParams(
            dimension_semantics=("arbitrary",),
            vmem_limit_bytes=_vmem_limit(est, cap),
        ),
        cost_estimate=pl.CostEstimate(
            flops=2 * m_pad * m_pad * k_pad,
            transcendentals=0,
            bytes_accessed=m_pad * k_pad * itemsize + m_pad * m_pad * 4,
        ),
    )(feats)


def gram_matrix(x, block_k=None, use_bf16=False):
    """Normalized gram matrix, matching the PyTorch gram_matrix()."""
    a, b, c, d = x.shape
    m = a * b
    m_pad = _round_up(m, _sublane(x.dtype))
    g = _gram_padded(x, m_pad, block_k=block_k, use_bf16=use_bf16)
    return g[:m, :m]


def _style_loss(x, target_padded, m_real, m_pad, block_k=None, use_bf16=False):
    a, b, c, d = x.shape
    itemsize = jnp.dtype(x.dtype).itemsize
    feats, k_pad = _prep_features(x, m_pad)
    cap = _vmem_capacity()
    bk = _pick_block_k(k_pad, m_pad, itemsize, cap, block_k)
    kt = -(-k_pad // bk)
    ragged = (kt * bk != k_pad)
    inv_n = 1.0 / float(a * b * c * d)        # x's own gram normalization
    inv_mm = 1.0 / float(m_real * m_real)     # mean over the real (M, M) gram
    kernel = functools.partial(_style_loss_kernel, bk=bk, k_pad=k_pad,
                               ragged=ragged, inv_n=inv_n, inv_mm=inv_mm,
                               use_bf16=use_bf16)
    est = 2 * m_pad * bk * itemsize + 3 * m_pad * m_pad * 4

    loss = pl.pallas_call(
        kernel,
        out_shape=jax.ShapeDtypeStruct((1, 1), jnp.float32),
        grid_spec=pltpu.PrefetchScalarGridSpec(
            num_scalar_prefetch=0,
            grid=(kt,),
            in_specs=[
                pl.BlockSpec((m_pad, bk), lambda kk: (0, kk)),
                pl.BlockSpec((m_pad, m_pad), lambda kk: (0, 0)),
            ],
            out_specs=pl.BlockSpec(memory_space=pltpu.MemorySpace.SMEM),
            scratch_shapes=[pltpu.VMEM((m_pad, m_pad), jnp.float32)],
        ),
        compiler_params=pltpu.CompilerParams(
            dimension_semantics=("arbitrary",),
            vmem_limit_bytes=_vmem_limit(est, cap),
        ),
        cost_estimate=pl.CostEstimate(
            flops=2 * m_pad * m_pad * k_pad + 3 * m_pad * m_pad,
            transcendentals=0,
            bytes_accessed=m_pad * k_pad * itemsize + m_pad * m_pad * 4 + 4,
        ),
    )(feats, target_padded)
    return loss[0, 0]


class StyleLoss:
    """Pallas port of the PyTorch StyleLoss module.

    forward(x) returns x unchanged and stores MSE(gram(x), gram(target)) in
    self.loss, mirroring the nn.Module (self.loss is Python-side state; when
    composing under jit/vmap call _style_loss directly)."""

    def __init__(self, target_feature, block_k=None, use_bf16=False):
        a, b, c, d = target_feature.shape
        self._m = a * b
        self._block_k = block_k
        self._use_bf16 = use_bf16
        self._m_pad = _round_up(self._m, _sublane(target_feature.dtype))
        # Target gram normalized by the *target's own* dims (PyTorch semantics),
        # kept padded + f32 for the fused kernel.
        self._target_padded = _gram_padded(
            target_feature, self._m_pad, block_k=block_k, use_bf16=use_bf16)
        self.target = self._target_padded[: self._m, : self._m]
        self.loss = None

    def __call__(self, x):
        a, b, c, d = x.shape
        assert a * b == self._m, "N*C of input must match the target feature"
        m_pad = _round_up(self._m, _sublane(x.dtype))
        target = self._target_padded
        if m_pad != target.shape[0]:          # dtype-driven sublane mismatch
            pad = m_pad - self._m
            target = jnp.pad(self.target, ((0, pad), (0, pad)))
        self.loss = _style_loss(x, target, self._m, m_pad,
                                block_k=self._block_k, use_bf16=self._use_bf16)
        return x


# ---------------------------------------------------------------------------
# Pure-JAX reference for verification
# ---------------------------------------------------------------------------
def _gram_ref(x):
    a, b, c, d = x.shape
    f = x.reshape(a * b, c * d).astype(jnp.float32)
    g = jnp.matmul(f, f.T, precision=jax.lax.Precision.HIGHEST)
    return g / (a * b * c * d)


def _style_loss_ref(x, target_feature):
    return jnp.mean((_gram_ref(x) - _gram_ref(target_feature)) ** 2)


# ---------------------------------------------------------------------------
if __name__ == "__main__":
    key = jax.random.PRNGKey(0)
    k1, k2, k3, k4, k5, k6, k7, k8, k9 = jax.random.split(key, 9)

    # Test 1: standard small NCHW shape (batch=2, channels=4, spatial=16x16).
    target_feature = jax.random.normal(k1, (2, 4, 16, 16), dtype=jnp.float32)
    x = jax.random.normal(k2, (2, 4, 16, 16), dtype=jnp.float32)
    module = StyleLoss(target_feature)
    out = jax.block_until_ready(module(x))
    loss = jax.block_until_ready(module.loss)
    ref_loss = _style_loss_ref(x, target_feature)
    assert out.shape == x.shape and jnp.allclose(out, x)
    assert jnp.allclose(loss, ref_loss, rtol=1e-3, atol=2e-6), (loss, ref_loss)

    # gram_matrix wrapper check.
    g = gram_matrix(x)
    assert jnp.allclose(g, _gram_ref(x), rtol=1e-3, atol=1e-5)

    # Test 2: multi-step K accumulation (block_k=128 -> grid=(2,)) plus a
    # non-multiple-of-8 channel count so M sublane padding is exercised.
    tgt2 = jax.random.normal(k3, (2, 3, 16, 16), dtype=jnp.float32)
    x2 = jax.random.normal(k4, (2, 3, 16, 16), dtype=jnp.float32)
    module2 = StyleLoss(tgt2, block_k=128)
    _ = jax.block_until_ready(module2(x2))
    loss2 = jax.block_until_ready(module2.loss)
    ref2 = _style_loss_ref(x2, tgt2)
    assert jnp.allclose(loss2, ref2, rtol=1e-3, atol=2e-6), (loss2, ref2)

    # Test 3: ragged last K tile (K=384, block_k=256 -> last tile half valid),
    # exercising the in-kernel OOB-column masking.
    tgt3 = jax.random.normal(k5, (1, 8, 16, 24), dtype=jnp.float32)
    x3 = jax.random.normal(k6, (1, 8, 16, 24), dtype=jnp.float32)
    module3 = StyleLoss(tgt3, block_k=256)
    _ = jax.block_until_ready(module3(x3))
    loss3 = jax.block_until_ready(module3.loss)
    ref3 = _style_loss_ref(x3, tgt3)
    assert jnp.allclose(loss3, ref3, rtol=1e-3, atol=2e-6), (loss3, ref3)

    # Test 4: K not a multiple of 128 (spatial 10x10 -> K=100), minimal pad path.
    tgt4 = jax.random.normal(k7, (2, 3, 10, 10), dtype=jnp.float32)
    x4 = jax.random.normal(k8, (2, 3, 10, 10), dtype=jnp.float32)
    module4 = StyleLoss(tgt4)
    _ = jax.block_until_ready(module4(x4))
    loss4 = jax.block_until_ready(module4.loss)
    ref4 = _style_loss_ref(x4, tgt4)
    assert jnp.allclose(loss4, ref4, rtol=1e-3, atol=2e-6), (loss4, ref4)

    # Test 5: input and target with different spatial dims (each gram is
    # normalized by its own dims, as in PyTorch).
    x5 = jax.random.normal(k9, (2, 4, 8, 8), dtype=jnp.float32)
    _ = jax.block_until_ready(module(x5))
    loss5 = jax.block_until_ready(module.loss)
    ref5 = _style_loss_ref(x5, target_feature)
    assert jnp.allclose(loss5, ref5, rtol=1e-3, atol=2e-6), (loss5, ref5)

    print("KERNEL_OK")
</pallas_src>

<mosaic_0001>
module attributes {stable_mosaic.version = 11 : i64} {
  func.func @_gram_kernel(%arg0: i32, %arg1: memref<8x256xf32, #tpu.memory_space<vmem>>, %arg2: memref<8x8xf32, #tpu.memory_space<vmem>>) attributes {dimension_semantics = [#tpu.dimension_semantics<arbitrary>], iteration_bounds = array<i64: 1>, scalar_prefetch = 0 : i64, scratch_operands = 0 : i64, tpu.core_type = #tpu.core_type<tc>, window_params = [{transform_indices = @transform_0, window_bounds = array<i64: 8, 256>}, {pipeline_mode = #tpu.pipeline_mode<synchronous>, transform_indices = @transform_1, window_bounds = array<i64: 8, 8>}]} {
    %c0_i32 = arith.constant 0 : i32
    %0 = arith.cmpi eq, %arg0, %c0_i32 : i32
    %1 = arith.extui %0 : i1 to i32
    %c0_i32_0 = arith.constant 0 : i32
    %2 = arith.cmpi ne, %1, %c0_i32_0 : i32
    scf.if %2 {
      %cst_8 = arith.constant 0.000000e+00 : f32
      %11 = vector.broadcast %cst_8 : f32 to vector<8x8xf32>
      %c0_9 = arith.constant 0 : index
      %c0_10 = arith.constant 0 : index
      %12 = vector.load %arg2[%c0_9, %c0_10] : memref<8x8xf32, #tpu.memory_space<vmem>>, vector<8x8xf32>
      tpu.vector_store %arg2[%c0_9, %c0_10], %11 {strides = array<i32>} : memref<8x8xf32, #tpu.memory_space<vmem>>, vector<8x8xf32>,
    } else {
    }
    %c0 = arith.constant 0 : index
    %c0_1 = arith.constant 0 : index
    %3 = vector.load %arg1[%c0, %c0_1] : memref<8x256xf32, #tpu.memory_space<vmem>>, vector<8x256xf32>
    %c0_2 = arith.constant 0 : index
    %c0_3 = arith.constant 0 : index
    %4 = vector.load %arg2[%c0_2, %c0_3] : memref<8x8xf32, #tpu.memory_space<vmem>>, vector<8x8xf32>
    %cst = arith.constant dense<0.000000e+00> : vector<8x8xf32>
    %5 = tpu.matmul %3, %3, %cst {dimension_numbers = #tpu.dot_dimension_numbers<[1], [1], [0], [0], [0, 0, 1, 0], [], []>} : vector<8x256xf32>, vector<8x256xf32>, vector<8x8xf32> -> vector<8x8xf32>
    %6 = arith.addf %4, %5 : vector<8x8xf32>
    %c0_4 = arith.constant 0 : index
    %c0_5 = arith.constant 0 : index
    %7 = vector.load %arg2[%c0_4, %c0_5] : memref<8x8xf32, #tpu.memory_space<vmem>>, vector<8x8xf32>
    tpu.vector_store %arg2[%c0_4, %c0_5], %6 {strides = array<i32>} : memref<8x8xf32, #tpu.memory_space<vmem>>, vector<8x8xf32>,
    %c0_i32_6 = arith.constant 0 : i32
    %8 = arith.cmpi eq, %arg0, %c0_i32_6 : i32
    %9 = arith.extui %8 : i1 to i32
    %c0_i32_7 = arith.constant 0 : i32
    %10 = arith.cmpi ne, %9, %c0_i32_7 : i32
    scf.if %10 {
      %c0_8 = arith.constant 0 : index
      %c0_9 = arith.constant 0 : index
      %11 = vector.load %arg2[%c0_8, %c0_9] : memref<8x8xf32, #tpu.memory_space<vmem>>, vector<8x8xf32>
      %cst_10 = arith.constant 4.8828125E-4 : f32
      %12 = vector.broadcast %cst_10 : f32 to vector<8x8xf32>
      %13 = arith.mulf %11, %12 : vector<8x8xf32>
      %c0_11 = arith.constant 0 : index
      %c0_12 = arith.constant 0 : index
      %14 = vector.load %arg2[%c0_11, %c0_12] : memref<8x8xf32, #tpu.memory_space<vmem>>, vector<8x8xf32>
      tpu.vector_store %arg2[%c0_11, %c0_12], %13 {strides = array<i32>} : memref<8x8xf32, #tpu.memory_space<vmem>>, vector<8x8xf32>,
    } else {
    }
    return
  }
  func.func @transform_0(%arg0: i32) -> (i32, i32) {
    %c0_i32 = arith.constant 0 : i32
    %c0_i32_0 = arith.constant 0 : i32
    return %c0_i32, %arg0 : i32, i32
  }
  func.func @transform_1(%arg0: i32) -> (i32, i32) {
    %c0_i32 = arith.constant 0 : i32
    %c0_i32_0 = arith.constant 0 : i32
    %c0_i32_1 = arith.constant 0 : i32
    return %c0_i32, %c0_i32_0 : i32, i32
  }
}

</mosaic_0001>

<llo_original>
// kernel: tpu_custom_call.1
$region0: #{tpu_custom_call.1}
  #allocation0 [shape = 'u32[]', space=smem, size = 0x4, offset = 0x4, fixed_abs, tag = 'smem constant byte address 0x4 - core index']
  #allocation1 [shape = 'u32[144,128]{1,0:T(1,128)}', space=vmem, size = 0x12000, scoped, tag = 'internal scratch']
  %s0 = inlined_call_operand.hbm [shape: f32[8,256], index: 0, kind: input, shape index: {}]
  %s1 = inlined_call_operand.hbm [shape: f32[8,8], index: 1, kind: output, shape index: {}]
  %s2 = sld [smem:[#allocation0]]
  $region26: #{tpu_custom_call.1} parent=0
    _
  %s4 = ssub.s32 1, %s2
  %s5 = scalar_select 0, %s4, %s2
  $region1: #{tpu_custom_call.1} parent=0
    #allocation2 [shape = 'u8[8192]{0}', space=vmem, size = 0x2000, scoped, tag = 'input window, operand 0, single buffered']
    #allocation3 [shape = 's32[1]{0}', space=sflag, size = 0x4, scoped, tag = 'scoped memory for tpu_custom_call.1']
    #allocation4 [shape = 's32[1]{0}', space=sflag, size = 0x4, scoped, tag = 'scoped memory for tpu_custom_call.1']
    #allocation5 [shape = 'u8[4096]{0}', space=vmem, size = 0x1000, scoped, tag = 'output window, operand 0, single buffered']
    %6 = vsyncpa [#allocation3], 0
    %7 = vsyncpa [#allocation4], 0
    // Predicated region
    $region2: #{tpu_custom_call.1} parent=1 // pred_check
      _
    $region3: #{tpu_custom_call.1} parent=1 // pred_check_branch
      %9 = sbr.rel (0) target = $region5
    $region4: #{tpu_custom_call.1} parent=1 // pred_region
      %s11 = ssub.s32 256, 256
      %12 = vsyncadd [#allocation3], %s11
      %s14 = sshll.u32 [#allocation2], 4
      %s15 = int_to_ptr.vmem [resolvable:$true] %s14
      %17 = dma.hbm_to_vmem [thread:$0]  %s0, 256, %s15, [#allocation3]
    $region5: #{tpu_custom_call.1} parent=1 // pred_fallthru
      _
    // Predicated region
    $region6: #{tpu_custom_call.1} parent=1 // pred_check
      _
    $region7: #{tpu_custom_call.1} parent=1 // pred_check_branch
      %19 = sbr.rel (0) target = $region9
    $region8: #{tpu_custom_call.1} parent=1 // pred_region
      %20 = dma.done [#allocation3], 256
    $region9: #{tpu_custom_call.1} parent=1 // pred_fallthru
      _
    %p21 = scmp.eq.s32.totalorder 0, 0
    // Predicated region
    $region10: #{tpu_custom_call.1} parent=1 // pred_check
      %p22 = pneg %p21
    $region11: #{tpu_custom_call.1} parent=1 // pred_check_branch
      %24 = sbr.rel (%p22) target = $region13
    $region12: #{tpu_custom_call.1} parent=1 // pred_region
      %vm25 = vcmask 64512
      %26 = vst.msk [vmem:[#allocation5] sm:$0xff] %vm25, 0.0
    $region13: #{tpu_custom_call.1} parent=1 // pred_fallthru
      _
    %v27 = vld [vmem:[#allocation2] sm:$0xff]
    %v28 = vld [vmem:[#allocation2 + $0x8] sm:$0xff]
    %v29 = vld [vmem:[#allocation5] sm:$0xff]
    %30 = vmatprep.subr.mxu0 %v28
    %31 = vmatpush1.xpose.msra.mxu0 %v27
    %32 = vmatprep.subr.mxu0 0.0
    %33 = vmatpush1.xpose.msra.mxu0 0.0
    %34 = vmatprep.subr.mxu0 0.0
    %35 = vmatpush1.xpose.msra.mxu0 0.0
    %36 = vmatprep.subr.mxu0 0.0
    %37 = vmatpush1.xpose.msra.mxu0 0.0
    %38 = vmatprep.subr.mxu0 0.0
    %39 = vmatpush1.xpose.msra.mxu0 0.0
    %40 = vmatprep.subr.mxu0 0.0
    %41 = vmatpush1.xpose.msra.mxu0 0.0
    %42 = vmatprep.subr.mxu0 0.0
    %43 = vmatpush1.xpose.msra.mxu0 0.0
    %44 = vmatprep.subr.mxu0 0.0
    %45 = vmatpush1.xpose.msra.mxu0 0.0
    %46 = vmatprep.subr.mxu0 0.0
    %47 = vmatpush1.xpose.msra.mxu0 0.0
    %48 = vmatprep.subr.mxu0 0.0
    %49 = vmatpush1.xpose.msra.mxu0 0.0
    %50 = vmatprep.subr.mxu0 0.0
    %51 = vmatpush1.xpose.msra.mxu0 0.0
    %52 = vmatprep.subr.mxu0 0.0
    %53 = vmatpush1.xpose.msra.mxu0 0.0
    %54 = vmatprep.subr.mxu0 0.0
    %55 = vmatpush1.xpose.msra.mxu0 0.0
    %56 = vmatprep.subr.mxu0 0.0
    %57 = vmatpush1.xpose.msra.mxu0 0.0
    %58 = vmatprep.subr.mxu0 0.0
    %59 = vmatpush1.xpose.msra.mxu0 0.0
    %60 = vmatprep.subr.mxu0 0.0
    %61 = vmatpush1.xpose.msra.mxu0 0.0
    %62 = vmatprep.subr.mxu0 0.0
    %63 = vmatpush1.xpose.msra.mxu0 0.0
    %64 = vmatprep.subr.mxu0 0.0
    %65 = vmatpush1.xpose.msra.mxu0 0.0
    %66 = vmatprep.subr.mxu0 0.0
    %67 = vmatpush1.xpose.msra.mxu0 0.0
    %68 = vmatprep.subr.mxu0 0.0
    %69 = vmatpush1.xpose.msra.mxu0 0.0
    %70 = vmatprep.subr.mxu0 0.0
    %71 = vmatpush1.xpose.msra.mxu0 0.0
    %72 = vmatprep.subr.mxu0 0.0
    %73 = vmatpush1.xpose.msra.mxu0 0.0
    %74 = vmatprep.subr.mxu0 0.0
    %75 = vmatpush1.xpose.msra.mxu0 0.0
    %76 = vmatprep.subr.mxu0 0.0
    %77 = vmatpush1.xpose.msra.mxu0 0.0
    %78 = vmatprep.subr.mxu0 0.0
    %79 = vmatpush1.xpose.msra.mxu0 0.0
    %80 = vmatprep.subr.mxu0 0.0
    %81 = vmatpush1.xpose.msra.mxu0 0.0
    %82 = vmatprep.subr.mxu0 0.0
    %83 = vmatpush1.xpose.msra.mxu0 0.0
    %84 = vmatprep.subr.mxu0 0.0
    %85 = vmatpush1.xpose.msra.mxu0 0.0
    %86 = vmatprep.subr.mxu0 0.0
    %87 = vmatpush1.xpose.msra.mxu0 0.0
    %88 = vmatprep.subr.mxu0 0.0
    %89 = vmatpush1.xpose.msra.mxu0 0.0
    %90 = vmatprep.subr.mxu0 0.0
    %91 = vmatpush1.xpose.msra.mxu0 0.0
    %92 = vmatprep.subr.mxu0 0.0
    %93 = vmatpush1.xpose.msra.mxu0 0.0
    %94 = vmatprep.mubr.f32.mxu0 %v28
    %95 = vmatmul.mubr.f32.gmra.mrb[0].mxu0 %v27
    %v96 = vpop.f32.mrb[0].mxu0
    %v97 = vadd.f32 0.0, %v96
    %v98 = vpop.f32.mrb[0].mxu0
    %99 = vdwg.mxu0
    %v100 = vadd.f32 %v29, %v97
    %vm101 = vcmask 64512
    %102 = vst.msk [vmem:[#allocation5] sm:$0xff] %vm101, %v100
    // Predicated region
    $region14: #{tpu_custom_call.1} parent=1 // pred_check
      %p103 = pneg %p21
    $region15: #{tpu_custom_call.1} parent=1 // pred_check_branch
      %105 = sbr.rel (%p103) target = $region17
    $region16: #{tpu_custom_call.1} parent=1 // pred_region
      %v106 = vld [vmem:[#allocation5] sm:$0xff]
      %v107 = vmul.f32 %v106, 0.00048828125
      %108 = vst.msk [vmem:[#allocation5] sm:$0xff] %vm101, %v107
    $region17: #{tpu_custom_call.1} parent=1 // pred_fallthru
      _
    // Predicated region
    $region18: #{tpu_custom_call.1} parent=1 // pred_check
      _
    $region19: #{tpu_custom_call.1} parent=1 // pred_check_branch
      %110 = sbr.rel (0) target = $region21
    $region20: #{tpu_custom_call.1} parent=1 // pred_region
      %s112 = ssub.s32 128, 128
      %113 = vsyncadd [#allocation4], %s112
      %s115 = sshll.u32 [#allocation5], 4
      %s116 = int_to_ptr.vmem [resolvable:$true] %s115
      %118 = dma.vmem_to_hbm [thread:$0]  %s116, 128, %s1, [#allocation4]
    $region21: #{tpu_custom_call.1} parent=1 // pred_fallthru
      _
    // Predicated region
    $region22: #{tpu_custom_call.1} parent=1 // pred_check
      _
    $region23: #{tpu_custom_call.1} parent=1 // pred_check_branch
      %120 = sbr.rel (0) target = $region25
    $region24: #{tpu_custom_call.1} parent=1 // pred_region
      %121 = dma.done [#allocation4], 128
    $region25: #{tpu_custom_call.1} parent=1 // pred_fallthru
      _
    %122 = vsyncpa [#allocation3], 1
    %123 = vsyncpa [#allocation4], 1

</llo_original>
